<compile_context>
chip_gen: v5e
topology: v5e:2x2
jax: 0.10.0
libtpu: 0.0.40
codegen_flags: <defaults>
</compile_context>

<pallas_src>
import jax
import jax.numpy as jnp
from jax.experimental import pallas as pl
from jax.experimental.pallas import tpu as pltpu


def _act_fn(activation):
    if activation == "relu":
        return lambda v: jnp.maximum(v, 0.0)
    if activation == "elu":
        return lambda v: jnp.where(v > 0, v, jnp.expm1(v))
    if activation == "sigmoid":
        return jax.nn.sigmoid
    raise ValueError(f"unsupported activation: {activation}")


# ----------------------------- Pallas kernel --------------------------------
def _make_senet_kernel(L, activation):
    act = _act_fn(activation)
    inv_L = 1.0 / float(L)

    def kernel(x_ref, w1_ref, b1_ref, w2_ref, b2_ref, o_ref):
        x = x_ref[...].astype(jnp.float32)                      # (Bblk, C, L)
        # squeeze: mean over length (lane reduction on the XLU)
        sq = jnp.sum(x, axis=2) * inv_L                         # (Bblk, C)
        # fc1 -> act1
        h = act(jnp.dot(sq, w1_ref[...],
                        preferred_element_type=jnp.float32) + b1_ref[...])
        # fc2 -> sigmoid gate
        g = jax.nn.sigmoid(jnp.dot(h, w2_ref[...],
                                   preferred_element_type=jnp.float32)
                           + b2_ref[...])                       # (Bblk, C)
        # channel-wise re-scale of the input
        o_ref[...] = (x * g[:, :, None]).astype(o_ref.dtype)

    return kernel


def senet_forward(x_ncl, params, activation):
    """x_ncl: (B, C, L) float32, PyTorch NCL layout. Returns (B, C, L)."""
    B, C, L = x_ncl.shape

    # torch Linear weights: fc1.weight (Cr, C), fc2.weight (C, Cr) -> transpose
    w1t = jnp.transpose(params["w1"]).astype(jnp.float32)       # (C, Cr)
    b1 = params["b1"][None, :].astype(jnp.float32)              # (1, Cr)
    w2t = jnp.transpose(params["w2"]).astype(jnp.float32)       # (Cr, C)
    b2 = params["b2"][None, :].astype(jnp.float32)              # (1, C)
    Cr = w1t.shape[1]

    # Grid: at most 2 parallel steps. Two steps let v7x's dual TensorCores each
    # take half the batch; on v5e/v6e it is still far cheaper than grid=(B,).
    G = 2 if (B >= 2 and B % 2 == 0) else 1
    Bblk = B // G

    full2 = lambda i: (0, 0)

    out = pl.pallas_call(
        _make_senet_kernel(L, activation),
        out_shape=jax.ShapeDtypeStruct((B, C, L), jnp.float32),
        grid_spec=pltpu.PrefetchScalarGridSpec(
            num_scalar_prefetch=0,
            grid=(G,),
            in_specs=[
                pl.BlockSpec((Bblk, C, L), lambda i: (i, 0, 0)),   # x
                pl.BlockSpec((C, Cr), full2),                      # W1^T
                pl.BlockSpec((1, Cr), full2),                      # b1
                pl.BlockSpec((Cr, C), full2),                      # W2^T
                pl.BlockSpec((1, C), full2),                       # b2
            ],
            out_specs=pl.BlockSpec((Bblk, C, L), lambda i: (i, 0, 0)),
        ),
        compiler_params=pltpu.CompilerParams(
            dimension_semantics=("parallel",)),
    )(x_ncl.astype(jnp.float32), w1t, b1, w2t, b2)

    return out


# ------------------------- pure-JAX reference (NCL) -------------------------
def senet_ref(x, params, activation):
    act = _act_fn(activation)
    sq = jnp.mean(x, axis=2)                                    # (B, C)
    h = act(sq @ params["w1"].T + params["b1"])                 # (B, Cr)
    g = jax.nn.sigmoid(h @ params["w2"].T + params["b2"])       # (B, C)
    return x * g[:, :, None]


# ---------------------------------- main -------------------------------------
if __name__ == "__main__":
    B, C, L = 2, 16, 16
    ratio = 4
    Cr = C // ratio
    activation = "relu"

    key = jax.random.PRNGKey(0)
    k = jax.random.split(key, 5)

    # torch.nn.Linear-style init: U(-1/sqrt(fan_in), 1/sqrt(fan_in))
    params = {
        "w1": jax.random.uniform(k[0], (Cr, C), minval=-1.0, maxval=1.0)
              / jnp.sqrt(float(C)),
        "b1": jax.random.uniform(k[1], (Cr,), minval=-1.0, maxval=1.0)
              / jnp.sqrt(float(C)),
        "w2": jax.random.uniform(k[2], (C, Cr), minval=-1.0, maxval=1.0)
              / jnp.sqrt(float(Cr)),
        "b2": jax.random.uniform(k[3], (C,), minval=-1.0, maxval=1.0)
              / jnp.sqrt(float(Cr)),
    }

    x = jax.random.normal(k[4], (B, C, L), dtype=jnp.float32)

    out = jax.block_until_ready(senet_forward(x, params, activation))
    ref = senet_ref(x, params, activation)

    assert out.shape == (B, C, L), out.shape
    assert jnp.allclose(out, ref, rtol=1e-4, atol=1e-5), (
        float(jnp.max(jnp.abs(out - ref))))

    print("KERNEL_OK")
</pallas_src>

<mosaic_0001>
module attributes {stable_mosaic.version = 11 : i64} {
  func.func @kernel(%arg0: i32, %arg1: memref<1x16x16xf32, #tpu.memory_space<vmem>>, %arg2: memref<16x4xf32, #tpu.memory_space<vmem>>, %arg3: memref<1x4xf32, #tpu.memory_space<vmem>>, %arg4: memref<4x16xf32, #tpu.memory_space<vmem>>, %arg5: memref<1x16xf32, #tpu.memory_space<vmem>>, %arg6: memref<1x16x16xf32, #tpu.memory_space<vmem>>) attributes {dimension_semantics = [#tpu.dimension_semantics<parallel>], iteration_bounds = array<i64: 2>, scalar_prefetch = 0 : i64, scratch_operands = 0 : i64, tpu.core_type = #tpu.core_type<tc>, window_params = [{transform_indices = @transform_0, window_bounds = array<i64: 1, 16, 16>}, {pipeline_mode = #tpu.pipeline_mode<synchronous>, transform_indices = @transform_1, window_bounds = array<i64: 16, 4>}, {pipeline_mode = #tpu.pipeline_mode<synchronous>, transform_indices = @transform_2, window_bounds = array<i64: 1, 4>}, {pipeline_mode = #tpu.pipeline_mode<synchronous>, transform_indices = @transform_3, window_bounds = array<i64: 4, 16>}, {pipeline_mode = #tpu.pipeline_mode<synchronous>, transform_indices = @transform_4, window_bounds = array<i64: 1, 16>}, {transform_indices = @transform_5, window_bounds = array<i64: 1, 16, 16>}]} {
    %c0 = arith.constant 0 : index
    %c0_0 = arith.constant 0 : index
    %c0_1 = arith.constant 0 : index
    %0 = vector.load %arg1[%c0, %c0_0, %c0_1] : memref<1x16x16xf32, #tpu.memory_space<vmem>>, vector<1x16x16xf32>
    %cst = arith.constant dense<0.000000e+00> : vector<1x16xf32>
    %1 = vector.multi_reduction <add>, %0, %cst [2] : vector<1x16x16xf32> to vector<1x16xf32>
    %cst_2 = arith.constant 6.250000e-02 : f32
    %2 = vector.broadcast %cst_2 : f32 to vector<1x16xf32>
    %3 = arith.mulf %1, %2 : vector<1x16xf32>
    %c0_3 = arith.constant 0 : index
    %c0_4 = arith.constant 0 : index
    %4 = vector.load %arg2[%c0_3, %c0_4] : memref<16x4xf32, #tpu.memory_space<vmem>>, vector<16x4xf32>
    %cst_5 = arith.constant dense<0.000000e+00> : vector<1x4xf32>
    %5 = tpu.matmul %3, %4, %cst_5 {dimension_numbers = #tpu.dot_dimension_numbers<[1], [0], [0], [1], [0, 0, 1, 1], [], []>} : vector<1x16xf32>, vector<16x4xf32>, vector<1x4xf32> -> vector<1x4xf32>
    %c0_6 = arith.constant 0 : index
    %c0_7 = arith.constant 0 : index
    %6 = vector.load %arg3[%c0_6, %c0_7] : memref<1x4xf32, #tpu.memory_space<vmem>>, vector<1x4xf32>
    %7 = arith.addf %5, %6 : vector<1x4xf32>
    %cst_8 = arith.constant 0.000000e+00 : f32
    %8 = vector.broadcast %cst_8 : f32 to vector<1x4xf32>
    %9 = arith.maximumf %7, %8 : vector<1x4xf32>
    %c0_9 = arith.constant 0 : index
    %c0_10 = arith.constant 0 : index
    %10 = vector.load %arg4[%c0_9, %c0_10] : memref<4x16xf32, #tpu.memory_space<vmem>>, vector<4x16xf32>
    %cst_11 = arith.constant dense<0.000000e+00> : vector<1x16xf32>
    %11 = tpu.matmul %9, %10, %cst_11 {dimension_numbers = #tpu.dot_dimension_numbers<[1], [0], [0], [1], [0, 0, 1, 1], [], []>} : vector<1x4xf32>, vector<4x16xf32>, vector<1x16xf32> -> vector<1x16xf32>
    %c0_12 = arith.constant 0 : index
    %c0_13 = arith.constant 0 : index
    %12 = vector.load %arg5[%c0_12, %c0_13] : memref<1x16xf32, #tpu.memory_space<vmem>>, vector<1x16xf32>
    %13 = arith.addf %11, %12 : vector<1x16xf32>
    %14 = arith.negf %13 : vector<1x16xf32>
    %15 = math.exp %14 : vector<1x16xf32>
    %cst_14 = arith.constant 1.000000e+00 : f32
    %16 = vector.broadcast %cst_14 : f32 to vector<1x16xf32>
    %17 = arith.addf %16, %15 : vector<1x16xf32>
    %18 = arith.divf %16, %17 : vector<1x16xf32>
    %19 = vector.shape_cast %18 : vector<1x16xf32> to vector<1x16x1xf32>
    %20 = vector.broadcast %19 : vector<1x16x1xf32> to vector<1x16x16xf32>
    %21 = arith.mulf %0, %20 : vector<1x16x16xf32>
    %c0_15 = arith.constant 0 : index
    %c0_16 = arith.constant 0 : index
    %c0_17 = arith.constant 0 : index
    %22 = vector.load %arg6[%c0_15, %c0_16, %c0_17] : memref<1x16x16xf32, #tpu.memory_space<vmem>>, vector<1x16x16xf32>
    tpu.vector_store %arg6[%c0_15, %c0_16, %c0_17], %21 {strides = array<i32>} : memref<1x16x16xf32, #tpu.memory_space<vmem>>, vector<1x16x16xf32>,
    return
  }
  func.func @transform_0(%arg0: i32) -> (i32, i32, i32) {
    %c0_i32 = arith.constant 0 : i32
    %c0_i32_0 = arith.constant 0 : i32
    %c0_i32_1 = arith.constant 0 : i32
    return %arg0, %c0_i32, %c0_i32_0 : i32, i32, i32
  }
  func.func @transform_1(%arg0: i32) -> (i32, i32) {
    %c0_i32 = arith.constant 0 : i32
    %c0_i32_0 = arith.constant 0 : i32
    %c0_i32_1 = arith.constant 0 : i32
    return %c0_i32, %c0_i32_0 : i32, i32
  }
  func.func @transform_2(%arg0: i32) -> (i32, i32) {
    %c0_i32 = arith.constant 0 : i32
    %c0_i32_0 = arith.constant 0 : i32
    %c0_i32_1 = arith.constant 0 : i32
    return %c0_i32, %c0_i32_0 : i32, i32
  }
  func.func @transform_3(%arg0: i32) -> (i32, i32) {
    %c0_i32 = arith.constant 0 : i32
    %c0_i32_0 = arith.constant 0 : i32
    %c0_i32_1 = arith.constant 0 : i32
    return %c0_i32, %c0_i32_0 : i32, i32
  }
  func.func @transform_4(%arg0: i32) -> (i32, i32) {
    %c0_i32 = arith.constant 0 : i32
    %c0_i32_0 = arith.constant 0 : i32
    %c0_i32_1 = arith.constant 0 : i32
    return %c0_i32, %c0_i32_0 : i32, i32
  }
  func.func @transform_5(%arg0: i32) -> (i32, i32, i32) {
    %c0_i32 = arith.constant 0 : i32
    %c0_i32_0 = arith.constant 0 : i32
    %c0_i32_1 = arith.constant 0 : i32
    return %arg0, %c0_i32, %c0_i32_0 : i32, i32, i32
  }
}

</mosaic_0001>

<llo_original>
// kernel: tpu_custom_call.1
$region0: #{tpu_custom_call.1}
  #allocation0 [shape = 'u32[]', space=smem, size = 0x4, offset = 0x4, fixed_abs, tag = 'smem constant byte address 0x4 - core index']
  #allocation1 [shape = 'u32[72,128]{1,0:T(1,128)}', space=vmem, size = 0x9000, scoped, tag = 'internal scratch']
  %s0 = inlined_call_operand.hbm [shape: f32[2,16,16], index: 0, kind: input, shape index: {}]
  %s1 = inlined_call_operand.vmem [shape: f32[16,4], index: 1, kind: input, shape index: {}]
  %s2 = inlined_call_operand.vmem [shape: f32[1,4], index: 2, kind: input, shape index: {}]
  %s3 = inlined_call_operand.vmem [shape: f32[4,16], index: 3, kind: input, shape index: {}]
  %s4 = inlined_call_operand.vmem [shape: f32[1,16], index: 4, kind: input, shape index: {}]
  %s5 = inlined_call_operand.hbm [shape: f32[2,16,16], index: 5, kind: output, shape index: {}]
  %s6 = sld [smem:[#allocation0]]
  $region57: #{tpu_custom_call.1} parent=0
    _
  %s8 = ssub.s32 1, %s6
  %s9 = scalar_select 0, %s8, %s6
  $region1: #{tpu_custom_call.1} parent=0
    #allocation2 [shape = 'u8[16384]{0}', space=vmem, size = 0x4000, scoped, tag = 'input window, operand 0']
    #allocation3 [shape = 's32[2]{0}', space=sflag, size = 0x8, scoped, tag = 'scoped memory for tpu_custom_call.1']
    #allocation4 [shape = 's32[2]{0}', space=sflag, size = 0x8, scoped, tag = 'scoped memory for tpu_custom_call.1']
    #allocation5 [shape = 'u8[16384]{0}', space=vmem, size = 0x4000, scoped, tag = 'output window, operand 0']
    %10 = vsyncpa [#allocation3], 0
    %s11 = scalar_lea.sflag [#allocation3], 1
    %12 = vsyncpa %s11, 0
    %13 = vsyncpa [#allocation4], 0
    %s14 = scalar_lea.sflag [#allocation4], 1
    %15 = vsyncpa %s14, 0
    loop: start=0, step=1, limit=4
    $region2: #{tpu_custom_call.1} parent=1 // loop_pre_header
      _
    $region3: #{tpu_custom_call.1} parent=1 // loop_header
      %s17 = sphi 0, %s21
      %p18 = scmp.ge.s32.totalorder %s17, 4
      %s27 = sphi 0, %s29
      %s30 = sphi 0, %s27
      %s31 = sphi 0, %s30
      %s47 = sphi 0, %s31
      %s51 = sphi 0, %s51
      %s53 = sphi 0, %s51
      %s54 = sphi 0, %s53
      %s68 = sphi 0, %s54
      %s72 = sphi 0, %s72
      %s74 = sphi 0, %s72
      %s75 = sphi 0, %s74
      %s89 = sphi 0, %s75
      %s93 = sphi 0, %s93
      %s95 = sphi 0, %s93
      %s96 = sphi 0, %s95
      %s110 = sphi 0, %s96
      %s114 = sphi 0, %s114
      %s116 = sphi 0, %s114
      %s117 = sphi 0, %s116
      %s131 = sphi 0, %s117
      %s137 = sphi 0, %s139
      %s140 = sphi 0, %s137
      %s141 = sphi 0, %s140
      %s157 = sphi 0, %s141
    $region4: #{tpu_custom_call.1} parent=1 // loop_header_branch
      %20 = sbr.rel (%p18) target = $region8
    $region5: #{tpu_custom_call.1} parent=1 // loop_body
      %s22 = ssub.s32 %s17, 1
      %s23 = ssub.s32 %s17, 2
      %s24 = sadd.s32 %s17, 1
      %s25 = ssub.s32 %s17, %s24
      %p26 = scmp.eq.s32.totalorder %s25, 0
      %s28 = sadd.s32 %s27, 1
      %s29 = scalar_select %p26, %s27, %s28
      %p32 = pneg %p26
      %p33 = scmp.eq.s32.totalorder %s17, 1
      %p34 = por %p32, %p33
      %p35 = scmp.ne.s32.totalorder %s27, %s30
      %p36 = scmp.eq.s32.totalorder %s17, 0
      %p37 = por %p35, %p36
      %p38 = scmp.ne.s32.totalorder %s27, %s30
      %p39 = scmp.eq.s32.totalorder %s22, 1
      %p40 = por %p38, %p39
      %p41 = scmp.ne.s32.totalorder %s30, %s31
      %p42 = scmp.eq.s32.totalorder %s22, 0
      %p43 = por %p41, %p42
      %p44 = scmp.ne.s32.totalorder %s30, %s31
      %p45 = scmp.eq.s32.totalorder %s23, 1
      %p46 = por %p44, %p45
      %p48 = scmp.ne.s32.totalorder %s31, %s47
      %p49 = scmp.eq.s32.totalorder %s23, 0
      %p50 = por %p48, %p49
      %s52 = sadd.s32 %s51, 1
      %p55 = scmp.eq.s32.totalorder %s17, 1
      %p56 = scmp.ne.s32.totalorder %s51, %s53
      %p57 = scmp.eq.s32.totalorder %s17, 0
      %p58 = por %p56, %p57
      %p59 = scmp.ne.s32.totalorder %s51, %s53
      %p60 = scmp.eq.s32.totalorder %s22, 1
      %p61 = por %p59, %p60
      %p62 = scmp.ne.s32.totalorder %s53, %s54
      %p63 = scmp.eq.s32.totalorder %s22, 0
      %p64 = por %p62, %p63
      %p65 = scmp.ne.s32.totalorder %s53, %s54
      %p66 = scmp.eq.s32.totalorder %s23, 1
      %p67 = por %p65, %p66
      %p69 = scmp.ne.s32.totalorder %s54, %s68
      %p70 = scmp.eq.s32.totalorder %s23, 0
      %p71 = por %p69, %p70
      %s73 = sadd.s32 %s72, 1
      %p76 = scmp.eq.s32.totalorder %s17, 1
      %p77 = scmp.ne.s32.totalorder %s72, %s74
      %p78 = scmp.eq.s32.totalorder %s17, 0
      %p79 = por %p77, %p78
      %p80 = scmp.ne.s32.totalorder %s72, %s74
      %p81 = scmp.eq.s32.totalorder %s22, 1
      %p82 = por %p80, %p81
      %p83 = scmp.ne.s32.totalorder %s74, %s75
      %p84 = scmp.eq.s32.totalorder %s22, 0
      %p85 = por %p83, %p84
      %p86 = scmp.ne.s32.totalorder %s74, %s75
      %p87 = scmp.eq.s32.totalorder %s23, 1
      %p88 = por %p86, %p87
      %p90 = scmp.ne.s32.totalorder %s75, %s89
      %p91 = scmp.eq.s32.totalorder %s23, 0
      %p92 = por %p90, %p91
      %s94 = sadd.s32 %s93, 1
      %p97 = scmp.eq.s32.totalorder %s17, 1
      %p98 = scmp.ne.s32.totalorder %s93, %s95
      %p99 = scmp.eq.s32.totalorder %s17, 0
      %p100 = por %p98, %p99
      %p101 = scmp.ne.s32.totalorder %s93, %s95
      %p102 = scmp.eq.s32.totalorder %s22, 1
      %p103 = por %p101, %p102
      %p104 = scmp.ne.s32.totalorder %s95, %s96
      %p105 = scmp.eq.s32.totalorder %s22, 0
      %p106 = por %p104, %p105
      %p107 = scmp.ne.s32.totalorder %s95, %s96
      %p108 = scmp.eq.s32.totalorder %s23, 1
      %p109 = por %p107, %p108
      %p111 = scmp.ne.s32.totalorder %s96, %s110
      %p112 = scmp.eq.s32.totalorder %s23, 0
      %p113 = por %p111, %p112
      %s115 = sadd.s32 %s114, 1
      %p118 = scmp.eq.s32.totalorder %s17, 1
      %p119 = scmp.ne.s32.totalorder %s114, %s116
      %p120 = scmp.eq.s32.totalorder %s17, 0
      %p121 = por %p119, %p120
      %p122 = scmp.ne.s32.totalorder %s114, %s116
      %p123 = scmp.eq.s32.totalorder %s22, 1
      %p124 = por %p122, %p123
      %p125 = scmp.ne.s32.totalorder %s116, %s117
      %p126 = scmp.eq.s32.totalorder %s22, 0
      %p127 = por %p125, %p126
      %p128 = scmp.ne.s32.totalorder %s116, %s117
      %p129 = scmp.eq.s32.totalorder %s23, 1
      %p130 = por %p128, %p129
      %p132 = scmp.ne.s32.totalorder %s117, %s131
      %p133 = scmp.eq.s32.totalorder %s23, 0
      %p134 = por %p132, %p133
      %s135 = ssub.s32 %s17, %s24
      %p136 = scmp.eq.s32.totalorder %s135, 0
      %s138 = sadd.s32 %s137, 1
      %s139 = scalar_select %p136, %s137, %s138
      %p142 = pneg %p136
      %p143 = scmp.eq.s32.totalorder %s17, 1
      %p144 = por %p142, %p143
      %p145 = scmp.ne.s32.totalorder %s137, %s140
      %p146 = scmp.eq.s32.totalorder %s17, 0
      %p147 = por %p145, %p146
      %p148 = scmp.ne.s32.totalorder %s137, %s140
      %p149 = scmp.eq.s32.totalorder %s22, 1
      %p150 = por %p148, %p149
      %p151 = scmp.ne.s32.totalorder %s140, %s141
      %p152 = scmp.eq.s32.totalorder %s22, 0
      %p153 = por %p151, %p152
      %p154 = scmp.ne.s32.totalorder %s140, %s141
      %p155 = scmp.eq.s32.totalorder %s23, 1
      %p156 = por %p154, %p155
      %p158 = scmp.ne.s32.totalorder %s141, %s157
      %p159 = scmp.eq.s32.totalorder %s23, 0
      %p160 = por %p158, %p159
      %p161 = scmp.le.s32.totalorder 1, %s17
      %p162 = scmp.lt.s32.totalorder %s17, 3
      %p163 = pnand %p161, %p162
      %p164 = pneg %p163
      // Predicated region
      $region9: #{tpu_custom_call.1} parent=5 // pred_check
        _
      $region10: #{tpu_custom_call.1} parent=5 // pred_check_branch
        %166 = sbr.rel (%p163) target = $region12
      $region11: #{tpu_custom_call.1} parent=5 // pred_region
        %s167 = ssub.s32 %s17, 1
        // Predicated region
        $region13: #{tpu_custom_call.1} parent=11 // pred_check
          %p168 = pneg %p64
        $region14: #{tpu_custom_call.1} parent=11 // pred_check_branch
          %170 = sbr.rel (%p168) target = $region16
        $region15: #{tpu_custom_call.1} parent=11 // pred_region
          _
        $region16: #{tpu_custom_call.1} parent=11 // pred_fallthru
          _
        // Predicated region
        $region17: #{tpu_custom_call.1} parent=11 // pred_check
          %p171 = pneg %p85
        $region18: #{tpu_custom_call.1} parent=11 // pred_check_branch
          %173 = sbr.rel (%p171) target = $region20
        $region19: #{tpu_custom_call.1} parent=11 // pred_region
          _
        $region20: #{tpu_custom_call.1} parent=11 // pred_fallthru
          _
        // Predicated region
        $region21: #{tpu_custom_call.1} parent=11 // pred_check
          %p174 = pneg %p106
        $region22: #{tpu_custom_call.1} parent=11 // pred_check_branch
          %176 = sbr.rel (%p174) target = $region24
        $region23: #{tpu_custom_call.1} parent=11 // pred_region
          _
        $region24: #{tpu_custom_call.1} parent=11 // pred_fallthru
          _
        // Predicated region
        $region25: #{tpu_custom_call.1} parent=11 // pred_check
          %p177 = pneg %p127
        $region26: #{tpu_custom_call.1} parent=11 // pred_check_branch
          %179 = sbr.rel (%p177) target = $region28
        $region27: #{tpu_custom_call.1} parent=11 // pred_region
          _
        $region28: #{tpu_custom_call.1} parent=11 // pred_fallthru
          _
      $region12: #{tpu_custom_call.1} parent=5 // pred_fallthru
        _
      %p180 = scmp.lt.s32.totalorder %s17, 2
      // Predicated region
      $region29: #{tpu_custom_call.1} parent=5 // pred_check
        %p181 = pneg %p180
      $region30: #{tpu_custom_call.1} parent=5 // pred_check_branch
        %183 = sbr.rel (%p181) target = $region32
      $region31: #{tpu_custom_call.1} parent=5 // pred_region
        // Predicated region
        $region33: #{tpu_custom_call.1} parent=31 // pred_check
          %p184 = pneg %p37
        $region34: #{tpu_custom_call.1} parent=31 // pred_check_branch
          %186 = sbr.rel (%p184) target = $region36
        $region35: #{tpu_custom_call.1} parent=31 // pred_region
          %s187 = sand.u32 %s27, 1
          %s188 = scalar_lea.sflag [#allocation3], %s187
          %s189 = sand.u32 %s27, 1
          %s190 = smul.addr %s189, 16
          %s191 = scalar_lea.vmem [#allocation2], %s190
          %193 = vsyncadd %s188, 0
          %s194 = smul.addr %s17, 2
          %s195 = smul.addr %s194, 8
          %s196 = scalar_lea.hbm %s0, %s195
          %s197 = sshll.u32 %s196, 4
          %s198 = int_to_ptr.hbm [resolvable:$true] %s197
          %s199 = sshll.u32 %s191, 4
          %s200 = int_to_ptr.vmem [resolvable:$true] %s199
          %205 = dma.hbm_to_vmem [thread:$0]  %s198, 256, %s200, %s188, 128, 128, 8
        $region36: #{tpu_custom_call.1} parent=31 // pred_fallthru
          _
      $region32: #{tpu_custom_call.1} parent=5 // pred_fallthru
        _
      %p206 = scmp.le.s32.totalorder 1, %s17
      %p207 = scmp.lt.s32.totalorder %s17, 3
      %p208 = pnand %p206, %p207
      %p209 = pneg %p208
      // Predicated region
      $region37: #{tpu_custom_call.1} parent=5 // pred_check
        _
      $region38: #{tpu_custom_call.1} parent=5 // pred_check_branch
        %211 = sbr.rel (%p208) target = $region40
      $region39: #{tpu_custom_call.1} parent=5 // pred_region
        %s212 = ssub.s32 %s17, 1
        %s213 = sand.u32 %s30, 1
        %s214 = scalar_lea.sflag [#allocation3], %s213
        %s215 = sand.u32 %s30, 1
        %s216 = smul.addr %s215, 16
        %s217 = scalar_lea.vmem [#allocation2], %s216
        // Predicated region
        $region41: #{tpu_custom_call.1} parent=39 // pred_check
          %p218 = pneg %p43
        $region42: #{tpu_custom_call.1} parent=39 // pred_check_branch
          %220 = sbr.rel (%p218) target = $region44
        $region43: #{tpu_custom_call.1} parent=39 // pred_region
          %222 = dma.done %s214, 256
        $region44: #{tpu_custom_call.1} parent=39 // pred_fallthru
          _
        %s223 = sand.u32 %s30, 1
        %s224 = scalar_lea.sflag [#allocation3], %s223
        %s225 = sand.u32 %s30, 1
        %s226 = smul.addr %s225, 16
        %s227 = scalar_lea.vmem [#allocation2], %s226
        %p228 = pneg %p43
        %p229 = pneg %p40
        %p230 = pneg %p64
        %p231 = pneg %p61
        %p232 = pneg %p85
        %p233 = pneg %p82
        %p234 = pneg %p106
        %p235 = pneg %p103
        %p236 = pneg %p127
        %p237 = pneg %p124
        %p238 = pneg %p153
        %p239 = pneg %p150
        %s240 = sand.u32 %s140, 1
        %s241 = scalar_lea.sflag [#allocation4], %s240
        %s242 = sand.u32 %s140, 1
        %s243 = smul.addr %s242, 16
        %s244 = scalar_lea.vmem [#allocation5], %s243
        %v245 = vld [vmem:[%s217] sm:$0xff]
        %v246 = vld [vmem:[%s217 + $0x8] sm:$0xff]
        %vm247 = vcmask 130048
        %v248 = vsel %vm247, %v245, 0.0
        %249 = vadd.xlane.f32.xlu0 %v248
        %v250 = vpop.xlane.xlu0 %249
        %v251 = vsel %vm247, %v246, 0.0
        %252 = vadd.xlane.f32.xlu0 %v251
        %v253 = vpop.xlane.xlu0 %252
        %v254 = vmul.f32 %v250, 0.0625
        %v255 = vmul.f32 %v253, 0.0625
        %v256 = vld [vmem:[%s1] sm:$0xff]
        %v257 = vld [vmem:[%s1 + $0x8] sm:$0xff]
        %v258 = vld [vmem:[%s2] sm:$0x1]
        %v261 = vlaneseq
        %v262 = vand.u32 %v261, 127
        %v263 = vperm.slane %v254, %v262
        %v264 = vadd.s32 %v262, 4294967288
        %v265 = vperm.slane %v255, %v264
        %vm266 = vcmask 130112
        %v267 = vsel %vm266, %v265, %v263
        %v268 = vsel %vm247, %v267, 0
        %270 = vmatpush.msra.mxu0 0.0
        %271 = vmatpush.msra.mxu0 0.0
        %272 = vmatpush.msra.mxu0 0.0
        %273 = vmatpush.msra.mxu0 0.0
        %274 = vmatpush.msra.mxu0 0.0
        %275 = vmatpush.msra.mxu0 0.0
        %276 = vmatpush.msra.mxu0 0.0
        %277 = vmatpush.msra.mxu0 0.0
        %278 = vmatpush.msra.mxu0 0.0
        %279 = vmatpush.msra.mxu0 0.0
        %280 = vmatpush.msra.mxu0 0.0
        %281 = vmatpush.msra.mxu0 0.0
        %282 = vmatpush.msra.mxu0 0.0
        %283 = vmatpush.msra.mxu0 0.0
        %284 = vmatpush.msra.mxu0 %v257
        %285 = vmatpush.msra.mxu0 %v256
        %286 = vmatmul.f32.gmra.mxu0 %v268
        %v287 = vpop.f32.mrf.mxu0
        %v288 = vadd.f32 %v258, %v287
        %289 = vdwg.mxu0
        %v290 = vmax.f32 %v288, 0.0
        %v291 = vld [vmem:[%s3] sm:$0xf]
        %v292 = vld [vmem:[%s4] sm:$0x1]
        %vm293 = vcmask 31744
        %v295 = vsel %vm293, %v290, 0
        %vm297 = vcmask 1043456
        %v299 = vsel %vm297, %v291, 0
        %301 = vmatpush.msra.mxu0 0.0
        %302 = vmatpush.msra.mxu0 0.0
        %303 = vmatpush.msra.mxu0 0.0
        %304 = vmatpush.msra.mxu0 0.0
        %305 = vmatpush.msra.mxu0 0.0
        %306 = vmatpush.msra.mxu0 0.0
        %307 = vmatpush.msra.mxu0 0.0
        %308 = vmatpush.msra.mxu0 0.0
        %309 = vmatpush.msra.mxu0 0.0
        %310 = vmatpush.msra.mxu0 0.0
        %311 = vmatpush.msra.mxu0 0.0
        %312 = vmatpush.msra.mxu0 0.0
        %313 = vmatpush.msra.mxu0 0.0
        %314 = vmatpush.msra.mxu0 0.0
        %315 = vmatpush.msra.mxu0 0.0
        %316 = vmatpush.msra.mxu0 %v299
        %317 = vmatmul.f32.gmra.mxu0 %v295
        %v318 = vpop.f32.mrf.mxu0
        %v319 = vadd.f32 %v292, %v318
        %320 = vdwg.mxu0
        %v321 = vxor.u32 %v319, 2147483648
        %v322 = vmul.f32 %v321, 1.442695
        %v323 = vpow.pop %v322
        %v324 = vadd.f32 %v323, 1.0
        %v325 = vrcp.pop %v324
        %v326 = vmul.f32 %v324, %v325
        %v327 = vsub.f32 1.0, %v326
        %v328 = vmul.f32 %v325, %v327
        %v329 = vadd.f32 %v325, %v328
        %vm330 = vweird.f32 %v324
        %vm331 = vweird.f32 %v325
        %vm332 = vmor %vm330, %vm331
        %v333 = vsel %vm332, %v325, %v329
        %v334 = vand.u32 2147483647, %v324
        %vm335 = vcmp.eq.f32.partialorder %v334, 8.507059e+37
        %v336 = vand.u32 %v324, 2147483648
        %v337 = vor.u32 1.1754944e-38, %v336
        %v338 = vsel %vm335, %v337, %v333
        %v339 = vmul.f32 1.0, %v338
        %v340 = vperm.slane %v339, 0
        %v341 = vlaneseq
        %v342 = vshrl.u32 %v341, 7
        %344 = vset.pattern.permute.xlu0 %v342
        %345 = vperm.xlu0 %344, %v340
        %v346 = vpop.permute.xlu0 %345
        %v347 = vlaneseq
        %v348 = vshrl.u32 %v347, 7
        %v349 = vadd.s32 %v348, 8
        %350 = vset.pattern.permute.xlu0 %v349
        %351 = vperm.xlu0 %350, %v340
        %v352 = vpop.permute.xlu0 %351
        %v353 = vmul.f32 %v245, %v346
        %v354 = vmul.f32 %v246, %v352
        %355 = vst.msk [vmem:[%s244] sm:$0xff] %vm247, %v353
        %356 = vst.msk [vmem:[%s244 + $0x8] sm:$0xff] %vm247, %v354
        %s357 = sand.u32 %s140, 1
        %s358 = scalar_lea.sflag [#allocation4], %s357
        %s359 = sand.u32 %s140, 1
        %s360 = smul.addr %s359, 16
        %s361 = scalar_lea.vmem [#allocation5], %s360
        // Predicated region
        $region45: #{tpu_custom_call.1} parent=39 // pred_check
          %p362 = pneg %p150
        $region46: #{tpu_custom_call.1} parent=39 // pred_check_branch
          %364 = sbr.rel (%p362) target = $region48
        $region47: #{tpu_custom_call.1} parent=39 // pred_region
          %366 = vsyncadd %s358, 0
          %s367 = smul.addr %s22, 2
          %s368 = smul.addr %s367, 8
          %s369 = scalar_lea.hbm %s5, %s368
          %s370 = sshll.u32 %s361, 4
          %s371 = int_to_ptr.vmem [resolvable:$true] %s370
          %s372 = sshll.u32 %s369, 4
          %s373 = int_to_ptr.hbm [resolvable:$true] %s372
          %378 = dma.vmem_to_hbm [thread:$0]  %s371, 256, %s373, %s358, 128, 128, 8
        $region48: #{tpu_custom_call.1} parent=39 // pred_fallthru
          _
      $region40: #{tpu_custom_call.1} parent=5 // pred_fallthru
        _
      %p379 = scmp.le.s32.totalorder 2, %s17
      // Predicated region
      $region49: #{tpu_custom_call.1} parent=5 // pred_check
        %p380 = pneg %p379
      $region50: #{tpu_custom_call.1} parent=5 // pred_check_branch
        %382 = sbr.rel (%p380) target = $region52
      $region51: #{tpu_custom_call.1} parent=5 // pred_region
        %s383 = ssub.s32 %s17, 2
        // Predicated region
        $region53: #{tpu_custom_call.1} parent=51 // pred_check
          %p384 = pneg %p156
        $region54: #{tpu_custom_call.1} parent=51 // pred_check_branch
          %386 = sbr.rel (%p384) target = $region56
        $region55: #{tpu_custom_call.1} parent=51 // pred_region
          %s387 = sand.u32 %s141, 1
          %s388 = scalar_lea.sflag [#allocation4], %s387
          %s389 = sand.u32 %s141, 1
          %s390 = smul.addr %s389, 16
          %s391 = scalar_lea.vmem [#allocation5], %s390
          %393 = dma.done %s388, 256
        $region56: #{tpu_custom_call.1} parent=51 // pred_fallthru
          _
      $region52: #{tpu_custom_call.1} parent=5 // pred_fallthru
        _
    $region6: #{tpu_custom_call.1} parent=1 // loop_footer
      %s21 = sadd.s32 1, %s17
    $region7: #{tpu_custom_call.1} parent=1 // loop_footer_branch
      %16 = sbr.rel target = $region3
    $region8: #{tpu_custom_call.1} parent=1 // loop_exit
      _
    %394 = vsyncpa [#allocation3], 1
    %s395 = scalar_lea.sflag [#allocation3], 1
    %396 = vsyncpa %s395, 1
    %397 = vsyncpa [#allocation4], 1
    %s398 = scalar_lea.sflag [#allocation4], 1
    %399 = vsyncpa %s398, 1

</llo_original>
